<compile_context>
chip_gen: v7x
topology: tpu7x:2x2x1
jax: 0.10.0
libtpu: 0.0.40
codegen_flags: <defaults>
</compile_context>

<pallas_src>
import functools

import jax
import jax.numpy as jnp
from jax.experimental import pallas as pl
from jax.experimental.pallas import tpu as pltpu


_SQRT1_2 = 0.7071067811865476


def _erf_approx(z):
    # TODO(synk): lax.erf has no Mosaic TPU lowering; use Abramowitz & Stegun 7.1.26
    # polynomial erf (|abs err| <= 1.5e-7) built from supported ops (exp, mul, where).
    a1, a2, a3, a4, a5 = 0.254829592, -0.284496736, 1.421413741, -1.453152027, 1.061405429
    p = 0.3275911
    az = jnp.abs(z)
    t = 1.0 / (1.0 + p * az)
    poly = ((((a5 * t + a4) * t + a3) * t + a2) * t + a1) * t
    y = 1.0 - poly * jnp.exp(-az * az)
    return jnp.where(z < 0, -y, y)


def _gelu_exact(x):
    # Matches PyTorch nn.GELU() default (approximate='none'): 0.5*x*(1+erf(x/sqrt(2)))
    return 0.5 * x * (1.0 + _erf_approx(x * _SQRT1_2))


def _ca_block_kernel(w1t_ref, b1_ref, w2_ref, b2_ref, x_ref, o_ref, *, act):
    # w1t_ref: (C, Cr)   transposed weight of conv1 (C -> Cr)
    # b1_ref : (1, Cr)
    # w2_ref : (C, Cr)   natural weight of conv2 (Cr -> C)
    # b2_ref : (C, 1)
    # x_ref  : (1, C, HW)   one sample, H*W on the lane axis
    # o_ref  : (1, C, HW)
    xs = x_ref[0].astype(jnp.float32)                                   # (C, HW)
    hw = xs.shape[-1]

    # Global average pool over spatial dims: XLU lane reduction.
    m = jnp.sum(xs, axis=1, keepdims=True) * (1.0 / hw)                 # (C, 1)

    # Conv2d(C -> Cr, k=1): h1[j] = sum_c W1[j, c] * m[c] + b1[j], as broadcast+reduce.
    h1 = jnp.sum(w1t_ref[...] * m, axis=0, keepdims=True) + b1_ref[...]  # (1, Cr)
    g = _gelu_exact(h1)                                                  # (1, Cr)

    # Conv2d(Cr -> C, k=1): h2[c] = sum_j W2[c, j] * g[j] + b2[c].
    h2 = jnp.sum(w2_ref[...] * g, axis=1, keepdims=True) + b2_ref[...]   # (C, 1)

    if act == "gelu":
        gate = _gelu_exact(h2)                                           # (C, 1)
    else:  # default: sigmoid
        gate = 1.0 / (1.0 + jnp.exp(-h2))                                # (C, 1)

    # Gate: lane-broadcast of the per-channel scale over H*W.
    o_ref[0] = (xs * gate).astype(o_ref.dtype)


def ca_block(x, w1, b1, w2, b2, act="sigmoid"):
    """Forward of CA_Block. x: (N, C, H, W); w1: (Cr, C); b1: (Cr,); w2: (C, Cr); b2: (C,)."""
    n, c, h, w = x.shape
    cr = w1.shape[0]
    assert w1.shape == (cr, c) and w2.shape == (c, cr)
    assert b1.shape == (cr,) and b2.shape == (c,)
    hw = h * w

    xf = x.reshape(n, c, hw)                       # free reshape, native dtype (no upcast)
    w1t = jnp.asarray(w1, jnp.float32).T           # (C, Cr)
    b1r = jnp.asarray(b1, jnp.float32).reshape(1, cr)
    w2r = jnp.asarray(w2, jnp.float32)             # (C, Cr)
    b2r = jnp.asarray(b2, jnp.float32).reshape(c, 1)

    kernel = functools.partial(_ca_block_kernel, act=act)

    out = pl.pallas_call(
        kernel,
        out_shape=jax.ShapeDtypeStruct((n, c, hw), x.dtype),
        grid_spec=pltpu.PrefetchScalarGridSpec(
            num_scalar_prefetch=0,
            grid=(n,),
            in_specs=[
                pl.BlockSpec((c, cr), lambda i: (0, 0)),       # W1^T, broadcast over grid
                pl.BlockSpec((1, cr), lambda i: (0, 0)),       # b1
                pl.BlockSpec((c, cr), lambda i: (0, 0)),       # W2
                pl.BlockSpec((c, 1), lambda i: (0, 0)),        # b2
                pl.BlockSpec((1, c, hw), lambda i: (i, 0, 0)),  # one (C, H*W) sample
            ],
            out_specs=pl.BlockSpec((1, c, hw), lambda i: (i, 0, 0)),
        ),
        compiler_params=pltpu.CompilerParams(
            dimension_semantics=("parallel",)),
    )(w1t, b1r, w2r, b2r, xf)

    return out.reshape(n, c, h, w)


if __name__ == "__main__":
    key = jax.random.PRNGKey(0)
    k1, k2, k3, k4, k5 = jax.random.split(key, 5)

    N, C, H, W = 2, 8, 16, 16
    reduction = 4
    Cr = C // reduction

    x = jax.random.normal(k1, (N, C, H, W), dtype=jnp.float32)
    w1 = jax.random.normal(k2, (Cr, C), dtype=jnp.float32) * (1.0 / C) ** 0.5
    b1 = jax.random.normal(k3, (Cr,), dtype=jnp.float32) * 0.1
    w2 = jax.random.normal(k4, (C, Cr), dtype=jnp.float32) * (1.0 / Cr) ** 0.5
    b2 = jax.random.normal(k5, (C,), dtype=jnp.float32) * 0.1

    y = ca_block(x, w1, b1, w2, b2, act="sigmoid")
    jax.block_until_ready(y)

    # Pure-JAX reference (exact erf GELU, as in nn.GELU()).
    m = x.mean(axis=(2, 3))                                  # (N, C)
    h1 = m @ w1.T + b1                                       # (N, Cr)
    g = 0.5 * h1 * (1.0 + jax.scipy.special.erf(h1 * _SQRT1_2))
    h2 = g @ w2.T + b2                                       # (N, C)
    gate = jax.nn.sigmoid(h2)
    ref = x * gate[:, :, None, None]

    assert y.shape == x.shape
    assert jnp.allclose(y, ref, atol=1e-4, rtol=1e-4), float(jnp.max(jnp.abs(y - ref)))
    print("KERNEL_OK")
</pallas_src>

<mosaic_0001>
module attributes {stable_mosaic.version = 11 : i64} {
  func.func @_ca_block_kernel(%arg0: i32, %arg1: memref<8x2xf32, #tpu.memory_space<vmem>>, %arg2: memref<1x2xf32, #tpu.memory_space<vmem>>, %arg3: memref<8x2xf32, #tpu.memory_space<vmem>>, %arg4: memref<8x1xf32, #tpu.memory_space<vmem>>, %arg5: memref<1x8x256xf32, #tpu.memory_space<vmem>>, %arg6: memref<1x8x256xf32, #tpu.memory_space<vmem>>) attributes {dimension_semantics = [#tpu.dimension_semantics<parallel>], iteration_bounds = array<i64: 2>, scalar_prefetch = 0 : i64, scratch_operands = 0 : i64, tpu.core_type = #tpu.core_type<tc>, window_params = [{pipeline_mode = #tpu.pipeline_mode<synchronous>, transform_indices = @transform_0, window_bounds = array<i64: 8, 2>}, {pipeline_mode = #tpu.pipeline_mode<synchronous>, transform_indices = @transform_1, window_bounds = array<i64: 1, 2>}, {pipeline_mode = #tpu.pipeline_mode<synchronous>, transform_indices = @transform_2, window_bounds = array<i64: 8, 2>}, {pipeline_mode = #tpu.pipeline_mode<synchronous>, transform_indices = @transform_3, window_bounds = array<i64: 8, 1>}, {transform_indices = @transform_4, window_bounds = array<i64: 1, 8, 256>}, {transform_indices = @transform_5, window_bounds = array<i64: 1, 8, 256>}]} {
    %c0 = arith.constant 0 : index
    %c0_0 = arith.constant 0 : index
    %c0_1 = arith.constant 0 : index
    %0 = vector.load %arg5[%c0, %c0_0, %c0_1] : memref<1x8x256xf32, #tpu.memory_space<vmem>>, vector<1x8x256xf32>
    %1 = vector.shape_cast %0 : vector<1x8x256xf32> to vector<8x256xf32>
    %cst = arith.constant dense<0.000000e+00> : vector<8xf32>
    %2 = vector.multi_reduction <add>, %1, %cst [1] : vector<8x256xf32> to vector<8xf32>
    %3 = vector.shape_cast %2 : vector<8xf32> to vector<8x1xf32>
    %cst_2 = arith.constant 3.906250e-03 : f32
    %4 = vector.broadcast %cst_2 : f32 to vector<8x1xf32>
    %5 = arith.mulf %3, %4 : vector<8x1xf32>
    %c0_3 = arith.constant 0 : index
    %c0_4 = arith.constant 0 : index
    %6 = vector.load %arg1[%c0_3, %c0_4] : memref<8x2xf32, #tpu.memory_space<vmem>>, vector<8x2xf32>
    %7 = vector.broadcast %5 : vector<8x1xf32> to vector<8x2xf32>
    %8 = arith.mulf %6, %7 : vector<8x2xf32>
    %cst_5 = arith.constant dense<0.000000e+00> : vector<2xf32>
    %9 = vector.multi_reduction <add>, %8, %cst_5 [0] : vector<8x2xf32> to vector<2xf32>
    %10 = vector.shape_cast %9 : vector<2xf32> to vector<1x2xf32>
    %c0_6 = arith.constant 0 : index
    %c0_7 = arith.constant 0 : index
    %11 = vector.load %arg2[%c0_6, %c0_7] : memref<1x2xf32, #tpu.memory_space<vmem>>, vector<1x2xf32>
    %12 = arith.addf %10, %11 : vector<1x2xf32>
    %cst_8 = arith.constant 5.000000e-01 : f32
    %13 = vector.broadcast %cst_8 : f32 to vector<1x2xf32>
    %14 = arith.mulf %13, %12 : vector<1x2xf32>
    %cst_9 = arith.constant 0.707106769 : f32
    %15 = vector.broadcast %cst_9 : f32 to vector<1x2xf32>
    %16 = arith.mulf %12, %15 : vector<1x2xf32>
    %17 = math.absf %16 : vector<1x2xf32>
    %cst_10 = arith.constant 0.327591091 : f32
    %18 = vector.broadcast %cst_10 : f32 to vector<1x2xf32>
    %19 = arith.mulf %18, %17 : vector<1x2xf32>
    %cst_11 = arith.constant 1.000000e+00 : f32
    %20 = vector.broadcast %cst_11 : f32 to vector<1x2xf32>
    %21 = arith.addf %20, %19 : vector<1x2xf32>
    %cst_12 = arith.constant 1.000000e+00 : f32
    %22 = vector.broadcast %cst_12 : f32 to vector<1x2xf32>
    %23 = arith.divf %22, %21 : vector<1x2xf32>
    %cst_13 = arith.constant 1.06140542 : f32
    %24 = vector.broadcast %cst_13 : f32 to vector<1x2xf32>
    %25 = arith.mulf %24, %23 : vector<1x2xf32>
    %cst_14 = arith.constant -1.45315206 : f32
    %26 = vector.broadcast %cst_14 : f32 to vector<1x2xf32>
    %27 = arith.addf %25, %26 : vector<1x2xf32>
    %28 = arith.mulf %27, %23 : vector<1x2xf32>
    %cst_15 = arith.constant 1.42141378 : f32
    %29 = vector.broadcast %cst_15 : f32 to vector<1x2xf32>
    %30 = arith.addf %28, %29 : vector<1x2xf32>
    %31 = arith.mulf %30, %23 : vector<1x2xf32>
    %cst_16 = arith.constant -0.284496725 : f32
    %32 = vector.broadcast %cst_16 : f32 to vector<1x2xf32>
    %33 = arith.addf %31, %32 : vector<1x2xf32>
    %34 = arith.mulf %33, %23 : vector<1x2xf32>
    %cst_17 = arith.constant 0.254829586 : f32
    %35 = vector.broadcast %cst_17 : f32 to vector<1x2xf32>
    %36 = arith.addf %34, %35 : vector<1x2xf32>
    %37 = arith.mulf %36, %23 : vector<1x2xf32>
    %cst_18 = arith.constant 0.000000e+00 : f32
    %38 = vector.broadcast %cst_18 : f32 to vector<1x2xf32>
    %39 = arith.subf %38, %17 : vector<1x2xf32>
    %40 = arith.mulf %39, %17 : vector<1x2xf32>
    %41 = math.exp %40 : vector<1x2xf32>
    %42 = arith.mulf %37, %41 : vector<1x2xf32>
    %cst_19 = arith.constant 1.000000e+00 : f32
    %43 = vector.broadcast %cst_19 : f32 to vector<1x2xf32>
    %44 = arith.subf %43, %42 : vector<1x2xf32>
    %cst_20 = arith.constant 0.000000e+00 : f32
    %45 = vector.broadcast %cst_20 : f32 to vector<1x2xf32>
    %46 = arith.cmpf olt, %16, %45 : vector<1x2xf32>
    %cst_21 = arith.constant 0.000000e+00 : f32
    %47 = vector.broadcast %cst_21 : f32 to vector<1x2xf32>
    %48 = arith.subf %47, %44 : vector<1x2xf32>
    %49 = arith.select %46, %48, %44 : vector<1x2xi1>, vector<1x2xf32>
    %cst_22 = arith.constant 1.000000e+00 : f32
    %50 = vector.broadcast %cst_22 : f32 to vector<1x2xf32>
    %51 = arith.addf %50, %49 : vector<1x2xf32>
    %52 = arith.mulf %14, %51 : vector<1x2xf32>
    %c0_23 = arith.constant 0 : index
    %c0_24 = arith.constant 0 : index
    %53 = vector.load %arg3[%c0_23, %c0_24] : memref<8x2xf32, #tpu.memory_space<vmem>>, vector<8x2xf32>
    %54 = vector.broadcast %52 : vector<1x2xf32> to vector<8x2xf32>
    %55 = arith.mulf %53, %54 : vector<8x2xf32>
    %cst_25 = arith.constant dense<0.000000e+00> : vector<8xf32>
    %56 = vector.multi_reduction <add>, %55, %cst_25 [1] : vector<8x2xf32> to vector<8xf32>
    %57 = vector.shape_cast %56 : vector<8xf32> to vector<8x1xf32>
    %c0_26 = arith.constant 0 : index
    %c0_27 = arith.constant 0 : index
    %58 = vector.load %arg4[%c0_26, %c0_27] : memref<8x1xf32, #tpu.memory_space<vmem>>, vector<8x1xf32>
    %59 = arith.addf %57, %58 : vector<8x1xf32>
    %cst_28 = arith.constant 0.000000e+00 : f32
    %60 = vector.broadcast %cst_28 : f32 to vector<8x1xf32>
    %61 = arith.subf %60, %59 : vector<8x1xf32>
    %62 = math.exp %61 : vector<8x1xf32>
    %cst_29 = arith.constant 1.000000e+00 : f32
    %63 = vector.broadcast %cst_29 : f32 to vector<8x1xf32>
    %64 = arith.addf %63, %62 : vector<8x1xf32>
    %cst_30 = arith.constant 1.000000e+00 : f32
    %65 = vector.broadcast %cst_30 : f32 to vector<8x1xf32>
    %66 = arith.divf %65, %64 : vector<8x1xf32>
    %67 = vector.broadcast %66 : vector<8x1xf32> to vector<8x256xf32>
    %68 = arith.mulf %1, %67 : vector<8x256xf32>
    %c0_31 = arith.constant 0 : index
    %c0_32 = arith.constant 0 : index
    %c0_33 = arith.constant 0 : index
    %69 = vector.load %arg6[%c0_31, %c0_32, %c0_33] : memref<1x8x256xf32, #tpu.memory_space<vmem>>, vector<1x8x256xf32>
    %70 = vector.shape_cast %69 : vector<1x8x256xf32> to vector<8x256xf32>
    %71 = vector.shape_cast %68 : vector<8x256xf32> to vector<1x8x256xf32>
    tpu.vector_store %arg6[%c0_31, %c0_32, %c0_33], %71 {strides = array<i32>} : memref<1x8x256xf32, #tpu.memory_space<vmem>>, vector<1x8x256xf32>,
    return
  }
  func.func @transform_0(%arg0: i32) -> (i32, i32) {
    %c0_i32 = arith.constant 0 : i32
    %c0_i32_0 = arith.constant 0 : i32
    %c0_i32_1 = arith.constant 0 : i32
    return %c0_i32, %c0_i32_0 : i32, i32
  }
  func.func @transform_1(%arg0: i32) -> (i32, i32) {
    %c0_i32 = arith.constant 0 : i32
    %c0_i32_0 = arith.constant 0 : i32
    %c0_i32_1 = arith.constant 0 : i32
    return %c0_i32, %c0_i32_0 : i32, i32
  }
  func.func @transform_2(%arg0: i32) -> (i32, i32) {
    %c0_i32 = arith.constant 0 : i32
    %c0_i32_0 = arith.constant 0 : i32
    %c0_i32_1 = arith.constant 0 : i32
    return %c0_i32, %c0_i32_0 : i32, i32
  }
  func.func @transform_3(%arg0: i32) -> (i32, i32) {
    %c0_i32 = arith.constant 0 : i32
    %c0_i32_0 = arith.constant 0 : i32
    %c0_i32_1 = arith.constant 0 : i32
    return %c0_i32, %c0_i32_0 : i32, i32
  }
  func.func @transform_4(%arg0: i32) -> (i32, i32, i32) {
    %c0_i32 = arith.constant 0 : i32
    %c0_i32_0 = arith.constant 0 : i32
    %c0_i32_1 = arith.constant 0 : i32
    return %arg0, %c0_i32, %c0_i32_0 : i32, i32, i32
  }
  func.func @transform_5(%arg0: i32) -> (i32, i32, i32) {
    %c0_i32 = arith.constant 0 : i32
    %c0_i32_0 = arith.constant 0 : i32
    %c0_i32_1 = arith.constant 0 : i32
    return %arg0, %c0_i32, %c0_i32_0 : i32, i32, i32
  }
}

</mosaic_0001>

<llo_original>
// kernel: tpu_custom_call.1
$region0: #{tpu_custom_call.1}
  #allocation0 [shape = 'u32[]', space=smem, size = 0x4, offset = 0x4, fixed_abs, tag = 'smem constant byte address 0x4 - core index']
  #allocation1 [shape = 'u32[144,128]{1,0:T(1,128)}', space=vmem, size = 0x12000, scoped, tag = 'internal scratch']
  %s0 = inlined_call_operand.vmem [shape: f32[8,2], index: 0, kind: input, shape index: {}]
  %s1 = inlined_call_operand.vmem [shape: f32[1,2], index: 1, kind: input, shape index: {}]
  %s2 = inlined_call_operand.vmem [shape: f32[8,2], index: 2, kind: input, shape index: {}]
  %s3 = inlined_call_operand.vmem [shape: f32[8,1], index: 3, kind: input, shape index: {}]
  %s4 = inlined_call_operand.vmem [shape: f32[2,8,256], index: 4, kind: input, shape index: {}]
  %s5 = inlined_call_operand.hbm [shape: f32[2,8,256], index: 5, kind: output, shape index: {}]
  %s6 = sld [smem:[#allocation0]]
  $region53: #{tpu_custom_call.1} parent=0
    _
  %s8 = ssub.s32 1, %s6
  %s9 = scalar_select 0, %s8, %s6
  $region1: #{tpu_custom_call.1} parent=0
    #allocation2 [shape = 'u8[16384]{0}', space=vmem, size = 0x4000, scoped, tag = 'output window, operand 0']
    #allocation3 [shape = 's32[2]{0}', space=sflag, size = 0x8, scoped, tag = 'scoped memory for tpu_custom_call.1']
    %10 = vsyncpa [#allocation3], 0
    %s11 = scalar_lea.sflag [#allocation3], 1
    %12 = vsyncpa %s11, 0
    loop: start=0, step=1, limit=4
    $region2: #{tpu_custom_call.1} parent=1 // loop_pre_header
      _
    $region3: #{tpu_custom_call.1} parent=1 // loop_header
      %s14 = sphi 0, %s18
      %p15 = scmp.ge.s32.totalorder %s14, 4
      %s22 = sphi 0, %s22
      %s24 = sphi 0, %s22
      %s25 = sphi 0, %s24
      %s39 = sphi 0, %s25
      %s43 = sphi 0, %s43
      %s45 = sphi 0, %s43
      %s46 = sphi 0, %s45
      %s60 = sphi 0, %s46
      %s64 = sphi 0, %s64
      %s66 = sphi 0, %s64
      %s67 = sphi 0, %s66
      %s81 = sphi 0, %s67
      %s85 = sphi 0, %s85
      %s87 = sphi 0, %s85
      %s88 = sphi 0, %s87
      %s102 = sphi 0, %s88
      %s108 = sphi 0, %s110
      %s111 = sphi 0, %s108
      %s112 = sphi 0, %s111
      %s128 = sphi 0, %s112
      %s134 = sphi 0, %s136
      %s137 = sphi 0, %s134
      %s138 = sphi 0, %s137
      %s154 = sphi 0, %s138
    $region4: #{tpu_custom_call.1} parent=1 // loop_header_branch
      %17 = sbr.rel (%p15) target = $region8
    $region5: #{tpu_custom_call.1} parent=1 // loop_body
      %s19 = ssub.s32 %s14, 1
      %s20 = ssub.s32 %s14, 2
      %s21 = sadd.s32 %s14, 1
      %s23 = sadd.s32 %s22, 1
      %p26 = scmp.eq.s32.totalorder %s14, 1
      %p27 = scmp.ne.s32.totalorder %s22, %s24
      %p28 = scmp.eq.s32.totalorder %s14, 0
      %p29 = por %p27, %p28
      %p30 = scmp.ne.s32.totalorder %s22, %s24
      %p31 = scmp.eq.s32.totalorder %s19, 1
      %p32 = por %p30, %p31
      %p33 = scmp.ne.s32.totalorder %s24, %s25
      %p34 = scmp.eq.s32.totalorder %s19, 0
      %p35 = por %p33, %p34
      %p36 = scmp.ne.s32.totalorder %s24, %s25
      %p37 = scmp.eq.s32.totalorder %s20, 1
      %p38 = por %p36, %p37
      %p40 = scmp.ne.s32.totalorder %s25, %s39
      %p41 = scmp.eq.s32.totalorder %s20, 0
      %p42 = por %p40, %p41
      %s44 = sadd.s32 %s43, 1
      %p47 = scmp.eq.s32.totalorder %s14, 1
      %p48 = scmp.ne.s32.totalorder %s43, %s45
      %p49 = scmp.eq.s32.totalorder %s14, 0
      %p50 = por %p48, %p49
      %p51 = scmp.ne.s32.totalorder %s43, %s45
      %p52 = scmp.eq.s32.totalorder %s19, 1
      %p53 = por %p51, %p52
      %p54 = scmp.ne.s32.totalorder %s45, %s46
      %p55 = scmp.eq.s32.totalorder %s19, 0
      %p56 = por %p54, %p55
      %p57 = scmp.ne.s32.totalorder %s45, %s46
      %p58 = scmp.eq.s32.totalorder %s20, 1
      %p59 = por %p57, %p58
      %p61 = scmp.ne.s32.totalorder %s46, %s60
      %p62 = scmp.eq.s32.totalorder %s20, 0
      %p63 = por %p61, %p62
      %s65 = sadd.s32 %s64, 1
      %p68 = scmp.eq.s32.totalorder %s14, 1
      %p69 = scmp.ne.s32.totalorder %s64, %s66
      %p70 = scmp.eq.s32.totalorder %s14, 0
      %p71 = por %p69, %p70
      %p72 = scmp.ne.s32.totalorder %s64, %s66
      %p73 = scmp.eq.s32.totalorder %s19, 1
      %p74 = por %p72, %p73
      %p75 = scmp.ne.s32.totalorder %s66, %s67
      %p76 = scmp.eq.s32.totalorder %s19, 0
      %p77 = por %p75, %p76
      %p78 = scmp.ne.s32.totalorder %s66, %s67
      %p79 = scmp.eq.s32.totalorder %s20, 1
      %p80 = por %p78, %p79
      %p82 = scmp.ne.s32.totalorder %s67, %s81
      %p83 = scmp.eq.s32.totalorder %s20, 0
      %p84 = por %p82, %p83
      %s86 = sadd.s32 %s85, 1
      %p89 = scmp.eq.s32.totalorder %s14, 1
      %p90 = scmp.ne.s32.totalorder %s85, %s87
      %p91 = scmp.eq.s32.totalorder %s14, 0
      %p92 = por %p90, %p91
      %p93 = scmp.ne.s32.totalorder %s85, %s87
      %p94 = scmp.eq.s32.totalorder %s19, 1
      %p95 = por %p93, %p94
      %p96 = scmp.ne.s32.totalorder %s87, %s88
      %p97 = scmp.eq.s32.totalorder %s19, 0
      %p98 = por %p96, %p97
      %p99 = scmp.ne.s32.totalorder %s87, %s88
      %p100 = scmp.eq.s32.totalorder %s20, 1
      %p101 = por %p99, %p100
      %p103 = scmp.ne.s32.totalorder %s88, %s102
      %p104 = scmp.eq.s32.totalorder %s20, 0
      %p105 = por %p103, %p104
      %s106 = ssub.s32 %s14, %s21
      %p107 = scmp.eq.s32.totalorder %s106, 0
      %s109 = sadd.s32 %s108, 1
      %s110 = scalar_select %p107, %s108, %s109
      %p113 = pneg %p107
      %p114 = scmp.eq.s32.totalorder %s14, 1
      %p115 = por %p113, %p114
      %p116 = scmp.ne.s32.totalorder %s108, %s111
      %p117 = scmp.eq.s32.totalorder %s14, 0
      %p118 = por %p116, %p117
      %p119 = scmp.ne.s32.totalorder %s108, %s111
      %p120 = scmp.eq.s32.totalorder %s19, 1
      %p121 = por %p119, %p120
      %p122 = scmp.ne.s32.totalorder %s111, %s112
      %p123 = scmp.eq.s32.totalorder %s19, 0
      %p124 = por %p122, %p123
      %p125 = scmp.ne.s32.totalorder %s111, %s112
      %p126 = scmp.eq.s32.totalorder %s20, 1
      %p127 = por %p125, %p126
      %p129 = scmp.ne.s32.totalorder %s112, %s128
      %p130 = scmp.eq.s32.totalorder %s20, 0
      %p131 = por %p129, %p130
      %s132 = ssub.s32 %s14, %s21
      %p133 = scmp.eq.s32.totalorder %s132, 0
      %s135 = sadd.s32 %s134, 1
      %s136 = scalar_select %p133, %s134, %s135
      %p139 = pneg %p133
      %p140 = scmp.eq.s32.totalorder %s14, 1
      %p141 = por %p139, %p140
      %p142 = scmp.ne.s32.totalorder %s134, %s137
      %p143 = scmp.eq.s32.totalorder %s14, 0
      %p144 = por %p142, %p143
      %p145 = scmp.ne.s32.totalorder %s134, %s137
      %p146 = scmp.eq.s32.totalorder %s19, 1
      %p147 = por %p145, %p146
      %p148 = scmp.ne.s32.totalorder %s137, %s138
      %p149 = scmp.eq.s32.totalorder %s19, 0
      %p150 = por %p148, %p149
      %p151 = scmp.ne.s32.totalorder %s137, %s138
      %p152 = scmp.eq.s32.totalorder %s20, 1
      %p153 = por %p151, %p152
      %p155 = scmp.ne.s32.totalorder %s138, %s154
      %p156 = scmp.eq.s32.totalorder %s20, 0
      %p157 = por %p155, %p156
      %p158 = scmp.le.s32.totalorder 1, %s14
      %p159 = scmp.lt.s32.totalorder %s14, 3
      %p160 = pnand %p158, %p159
      %p161 = pneg %p160
      // Predicated region
      $region9: #{tpu_custom_call.1} parent=5 // pred_check
        _
      $region10: #{tpu_custom_call.1} parent=5 // pred_check_branch
        %163 = sbr.rel (%p160) target = $region12
      $region11: #{tpu_custom_call.1} parent=5 // pred_region
        %s164 = ssub.s32 %s14, 1
        // Predicated region
        $region13: #{tpu_custom_call.1} parent=11 // pred_check
          %p165 = pneg %p35
        $region14: #{tpu_custom_call.1} parent=11 // pred_check_branch
          %167 = sbr.rel (%p165) target = $region16
        $region15: #{tpu_custom_call.1} parent=11 // pred_region
          _
        $region16: #{tpu_custom_call.1} parent=11 // pred_fallthru
          _
        // Predicated region
        $region17: #{tpu_custom_call.1} parent=11 // pred_check
          %p168 = pneg %p56
        $region18: #{tpu_custom_call.1} parent=11 // pred_check_branch
          %170 = sbr.rel (%p168) target = $region20
        $region19: #{tpu_custom_call.1} parent=11 // pred_region
          _
        $region20: #{tpu_custom_call.1} parent=11 // pred_fallthru
          _
        // Predicated region
        $region21: #{tpu_custom_call.1} parent=11 // pred_check
          %p171 = pneg %p77
        $region22: #{tpu_custom_call.1} parent=11 // pred_check_branch
          %173 = sbr.rel (%p171) target = $region24
        $region23: #{tpu_custom_call.1} parent=11 // pred_region
          _
        $region24: #{tpu_custom_call.1} parent=11 // pred_fallthru
          _
        // Predicated region
        $region25: #{tpu_custom_call.1} parent=11 // pred_check
          %p174 = pneg %p98
        $region26: #{tpu_custom_call.1} parent=11 // pred_check_branch
          %176 = sbr.rel (%p174) target = $region28
        $region27: #{tpu_custom_call.1} parent=11 // pred_region
          _
        $region28: #{tpu_custom_call.1} parent=11 // pred_fallthru
          _
      $region12: #{tpu_custom_call.1} parent=5 // pred_fallthru
        _
      %p177 = scmp.lt.s32.totalorder %s14, 2
      // Predicated region
      $region29: #{tpu_custom_call.1} parent=5 // pred_check
        %p178 = pneg %p177
      $region30: #{tpu_custom_call.1} parent=5 // pred_check_branch
        %180 = sbr.rel (%p178) target = $region32
      $region31: #{tpu_custom_call.1} parent=5 // pred_region
        // Predicated region
        $region33: #{tpu_custom_call.1} parent=31 // pred_check
          %p181 = pneg %p118
        $region34: #{tpu_custom_call.1} parent=31 // pred_check_branch
          %183 = sbr.rel (%p181) target = $region36
        $region35: #{tpu_custom_call.1} parent=31 // pred_region
          %p184 = scmp.lt.s32.totalorder %s14, 1
          %s185 = scalar_select %p184, %s14, 1
          %s186 = smul.addr %s185, 2
          %s187 = smul.addr %s186, 8
          %s188 = scalar_lea.vmem %s4, %s187
        $region36: #{tpu_custom_call.1} parent=31 // pred_fallthru
          _
      $region32: #{tpu_custom_call.1} parent=5 // pred_fallthru
        _
      %p189 = scmp.le.s32.totalorder 1, %s14
      %p190 = scmp.lt.s32.totalorder %s14, 3
      %p191 = pnand %p189, %p190
      %p192 = pneg %p191
      // Predicated region
      $region37: #{tpu_custom_call.1} parent=5 // pred_check
        _
      $region38: #{tpu_custom_call.1} parent=5 // pred_check_branch
        %194 = sbr.rel (%p191) target = $region40
      $region39: #{tpu_custom_call.1} parent=5 // pred_region
        %s195 = ssub.s32 %s14, 1
        %p196 = pneg %p35
        %p197 = pneg %p32
        %p198 = pneg %p56
        %p199 = pneg %p53
        %p200 = pneg %p77
        %p201 = pneg %p74
        %p202 = pneg %p98
        %p203 = pneg %p95
        %p204 = scmp.lt.s32.totalorder %s19, 1
        %s205 = scalar_select %p204, %s19, 1
        %s206 = smul.addr %s205, 2
        %s207 = smul.addr %s206, 8
        %s208 = scalar_lea.vmem %s4, %s207
        %p209 = pneg %p124
        %p210 = pneg %p121
        %p211 = pneg %p150
        %p212 = pneg %p147
        %s213 = sand.u32 %s137, 1
        %s214 = scalar_lea.sflag [#allocation3], %s213
        %s215 = sand.u32 %s137, 1
        %s216 = smul.addr %s215, 16
        %s217 = scalar_lea.vmem [#allocation2], %s216
        %p218 = scmp.lt.s32.totalorder %s19, 1
        %s219 = scalar_select %p218, %s19, 1
        %s220 = smul.addr %s219, 2
        %s221 = smul.addr %s220, 8
        %s222 = scalar_lea.vmem %s4, %s221
        %v223 = vld [vmem:[%s222] sm:$0xff]
        %v224 = vld [vmem:[%s222 + $0x8] sm:$0xff]
        %v225 = vadd.f32 %v223, %v224
        %226 = vadd.xlane.f32.xlu0 %v225
        %v227 = vpop.xlane.xlu0 %226
        %v228 = vmul.f32 %v227, 0.00390625
        %v229 = vld [vmem:[%s0] sm:$0xff]
        %v230 = vmul.f32 %v229, %v228
        %vm231 = vcmask 15360
        %v232 = vsel %vm231, %v230, 0.0
        %v233 = vrot.slane %v232, 4
        %v234 = vadd.f32 %v232, %v233
        %v235 = vrot.slane %v234, 2
        %v236 = vadd.f32 %v234, %v235
        %v237 = vrot.slane %v236, 1
        %v238 = vadd.f32 %v236, %v237
        %v239 = vld [vmem:[%s1] sm:$0x1]
        %v240 = vadd.f32 %v238, %v239
        %v241 = vmul.f32 %v240, 0.5
        %v242 = vmul.f32 %v240, 0.70710677
        %v243 = vand.u32 2147483647, %v242
        %v244 = vmul.f32 %v243, 0.3275911
        %v245 = vadd.f32 %v244, 1.0
        %v246 = vrcp.pop %v245
        %v247 = vmul.f32 1.0, %v246
        %v248 = vmul.f32 %v247, 1.0614054
        %v249 = vadd.f32 %v248, -1.4531521
        %v250 = vmul.f32 %v249, %v247
        %v251 = vadd.f32 %v250, 1.4214138
        %v252 = vmul.f32 %v251, %v247
        %v253 = vadd.f32 %v252, -0.28449672
        %v254 = vmul.f32 %v253, %v247
        %v255 = vadd.f32 %v254, 0.2548296
        %v256 = vmul.f32 %v255, %v247
        %v257 = vsub.f32 0.0, %v243
        %v258 = vmul.f32 %v257, %v243
        %v259 = vmul.f32 %v258, 1.442695
        %v260 = vpow.pop %v259
        %v261 = vmul.f32 %v256, %v260
        %v262 = vsub.f32 1.0, %v261
        %vm263 = vcmp.lt.f32.partialorder %v242, 0.0
        %v264 = vsub.f32 0.0, %v262
        %v265 = vsel %vm263, %v264, %v262
        %v266 = vadd.f32 %v265, 1.0
        %v267 = vmul.f32 %v241, %v266
        %v268 = vld [vmem:[%s2] sm:$0xff]
        %v269 = vlaneseq
        %v270 = vshrl.u32 %v269, 7
        %v271 = vsub.s32 0, %v270
        %v272 = vrot.slane %v267, %v271
        %v273 = vmul.f32 %v268, %v272
        %v274 = vsel %vm231, %v273, 0.0
        %275 = vadd.xlane.f32.xlu0 %v274
        %v276 = vpop.xlane.xlu0 %275
        %v277 = vld [vmem:[%s3] sm:$0xff]
        %v278 = vadd.f32 %v276, %v277
        %v279 = vsub.f32 0.0, %v278
        %v280 = vmul.f32 %v279, 1.442695
        %v281 = vpow.pop %v280
        %v282 = vadd.f32 %v281, 1.0
        %v283 = vrcp.pop %v282
        %v284 = vmul.f32 1.0, %v283
        %286 = vset.pattern.permute.xlu0 0
        %287 = vperm.xlu0 %286, %v284
        %v288 = vpop.permute.xlu0 %287
        %v290 = vmul.f32 %v223, %v288
        %v291 = vmul.f32 %v224, %v288
        %292 = vst [vmem:[%s217] sm:$0xff] %v290
        %293 = vst [vmem:[%s217 + $0x8] sm:$0xff] %v291
        %s294 = sand.u32 %s137, 1
        %s295 = scalar_lea.sflag [#allocation3], %s294
        %s296 = sand.u32 %s137, 1
        %s297 = smul.addr %s296, 16
        %s298 = scalar_lea.vmem [#allocation2], %s297
        // Predicated region
        $region41: #{tpu_custom_call.1} parent=39 // pred_check
          %p299 = pneg %p147
        $region42: #{tpu_custom_call.1} parent=39 // pred_check_branch
          %301 = sbr.rel (%p299) target = $region44
        $region43: #{tpu_custom_call.1} parent=39 // pred_region
          %s303 = ssub.s32 256, 256
          %304 = vsyncadd %s295, %s303
          %s305 = smul.addr %s19, 2
          %s306 = smul.addr %s305, 128
          %s307 = scalar_lea.hbm %s5, %s306
          %s309 = sshll.u32 %s298, 4
          %s310 = int_to_ptr.vmem [resolvable:$true] %s309
          %312 = dma.vmem_to_hbm [thread:$0]  %s310, 256, %s307, %s295
        $region44: #{tpu_custom_call.1} parent=39 // pred_fallthru
          _
      $region40: #{tpu_custom_call.1} parent=5 // pred_fallthru
        _
      %p313 = scmp.le.s32.totalorder 2, %s14
      // Predicated region
      $region45: #{tpu_custom_call.1} parent=5 // pred_check
        %p314 = pneg %p313
      $region46: #{tpu_custom_call.1} parent=5 // pred_check_branch
        %316 = sbr.rel (%p314) target = $region48
      $region47: #{tpu_custom_call.1} parent=5 // pred_region
        %s317 = ssub.s32 %s14, 2
        // Predicated region
        $region49: #{tpu_custom_call.1} parent=47 // pred_check
          %p318 = pneg %p153
        $region50: #{tpu_custom_call.1} parent=47 // pred_check_branch
          %320 = sbr.rel (%p318) target = $region52
        $region51: #{tpu_custom_call.1} parent=47 // pred_region
          %s321 = sand.u32 %s138, 1
          %s322 = scalar_lea.sflag [#allocation3], %s321
          %s323 = sand.u32 %s138, 1
          %s324 = smul.addr %s323, 16
          %s325 = scalar_lea.vmem [#allocation2], %s324
          %326 = dma.done %s322, 256
        $region52: #{tpu_custom_call.1} parent=47 // pred_fallthru
          _
      $region48: #{tpu_custom_call.1} parent=5 // pred_fallthru
        _
    $region6: #{tpu_custom_call.1} parent=1 // loop_footer
      %s18 = sadd.s32 1, %s14
    $region7: #{tpu_custom_call.1} parent=1 // loop_footer_branch
      %13 = sbr.rel target = $region3
    $region8: #{tpu_custom_call.1} parent=1 // loop_exit
      _
    %327 = vsyncpa [#allocation3], 1
    %s328 = scalar_lea.sflag [#allocation3], 1
    %329 = vsyncpa %s328, 1

</llo_original>
